<compile_context>
chip_gen: v7x
topology: tpu7x:2x2x1
jax: 0.10.0
libtpu: 0.0.40
codegen_flags: <defaults>
</compile_context>

<pallas_src>
import functools

import jax
import jax.numpy as jnp
from jax.experimental import pallas as pl
from jax.experimental.pallas import tpu as pltpu


def _round_up(n: int, m: int) -> int:
    return ((n + m - 1) // m) * m


_VMEM_BUDGET = None


def _vmem_budget_bytes() -> int:
    """Usable VMEM per TensorCore, with headroom for compiler scratch."""
    global _VMEM_BUDGET
    if _VMEM_BUDGET is None:
        try:
            cap = pltpu.get_tpu_info().vmem_capacity_bytes  # 128 MiB v5e/v6e, 64 MiB v7x
        except Exception:
            cap = 64 << 20  # conservative fallback, valid on every generation
        _VMEM_BUDGET = int(cap * 13 // 16)  # ~104 MiB (v5e/v6e) / ~52 MiB (v7x)
    return _VMEM_BUDGET


def _ffnn_resident_kernel(x_ref, w1_ref, b1_ref, w2_ref, b2_ref, o_ref):
    # x_ref: (tm, Hp) row tile; W1/W2/b1/b2 fully VMEM-resident (constant index).
    h = jnp.dot(x_ref[...], w1_ref[...], preferred_element_type=jnp.float32)
    h = jnp.maximum(h + b1_ref[...].astype(jnp.float32), 0.0)          # ReLU
    y = jnp.dot(h.astype(w2_ref.dtype), w2_ref[...],
                preferred_element_type=jnp.float32)
    o_ref[...] = (y + b2_ref[...].astype(jnp.float32)).astype(o_ref.dtype)


def _ffnn_streamed_kernel(x_ref, w1_ref, b1_ref, w2_ref, b2_ref, o_ref, acc_ref):
    # Tiles the intermediate hidden dim (axis k): W1 column slab, W2 row slab.
    k = pl.program_id(1)

    @pl.when(k == 0)
    def _():
        acc_ref[...] = jnp.zeros_like(acc_ref)

    h = jnp.dot(x_ref[...], w1_ref[...], preferred_element_type=jnp.float32)
    h = jnp.maximum(h + b1_ref[...].astype(jnp.float32), 0.0)          # ReLU
    acc_ref[...] += jnp.dot(h.astype(w2_ref.dtype), w2_ref[...],
                            preferred_element_type=jnp.float32)

    @pl.when(k == pl.num_programs(1) - 1)
    def _():
        o_ref[...] = (acc_ref[...] + b2_ref[...].astype(jnp.float32)).astype(o_ref.dtype)


@functools.partial(jax.jit, static_argnames=("tm", "tk", "force_tiled"))
def pointwise_ffnn(x, w1, b1, w2, b2, *, tm=None, tk=512, force_tiled=False):
    # x: (batch, seq, H); w1, w2: (H, H) stored as (in, out); b1, b2: (H,)
    batch, seq, H = x.shape
    M = batch * seq
    x_bytes = jnp.dtype(x.dtype).itemsize
    w_bytes = jnp.dtype(w1.dtype).itemsize

    Hp = max(_round_up(H, 128), 128)          # lane-dense hidden dim
    budget = _vmem_budget_bytes()

    # Adaptive row tile: bigger tiles in the HBM-bound small-H regime.
    if tm is None:
        tm = 512 if Hp <= 1024 else 256
    # Block equal to the full row extent is always legal; otherwise tm is a mult. of 8.
    tm_eff = M if M <= tm else tm

    def resident_bytes(t):
        return (3 * t * Hp * x_bytes          # x row tile (up to 3-deep buffering)
                + 2 * t * Hp * x_bytes        # output row tile (double-buffered)
                + 2 * Hp * Hp * w_bytes       # W1 + W2 (Buffered(1): single copy)
                + 2 * Hp * w_bytes            # b1 + b2 (Buffered(1))
                + 2 * t * Hp * 4)             # f32 h / y intermediates

    def streamed_bytes(t, k):
        return (2 * t * Hp * x_bytes          # x row tile
                + 2 * t * Hp * x_bytes        # output row tile
                + 2 * Hp * k * w_bytes        # W1 column slab (double-buffered)
                + 2 * k * Hp * w_bytes        # W2 row slab
                + 2 * k * w_bytes + Hp * w_bytes   # b1 slab + b2
                + t * Hp * 4                  # f32 accumulator scratch
                + t * k * 4)                  # f32 h intermediate

    use_resident = (not force_tiled) and resident_bytes(tm_eff) <= budget

    # --- Wrapper-side padding only when strictly required (H not lane-aligned). ---
    # TODO(synk): for production with H % 128 != 0, pad the weights once at init
    # instead of on every call.
    if Hp != H:
        x2d = jnp.pad(x.reshape(M, H), ((0, 0), (0, Hp - H)))
        w1_in = jnp.pad(w1, ((0, Hp - H), (0, Hp - H)))
        w2_in = jnp.pad(w2, ((0, Hp - H), (0, Hp - H)))
        b1_in = jnp.pad(b1, (0, Hp - H)).reshape(1, Hp)
        b2_in = jnp.pad(b2, (0, Hp - H)).reshape(1, Hp)
    else:
        x2d = x.reshape(M, H)
        w1_in, w2_in = w1, w2
        b1_in, b2_in = b1.reshape(1, H), b2.reshape(1, H)

    grid_m = pl.cdiv(M, tm_eff)   # ragged last row tile: writes masked, rows independent

    cost = pl.CostEstimate(
        flops=4 * M * Hp * Hp,    # two (M,Hp)x(Hp,Hp) matmuls
        transcendentals=0,
        bytes_accessed=2 * M * Hp * x_bytes + 2 * Hp * Hp * w_bytes + 2 * Hp * w_bytes,
    )

    if use_resident:
        per_step = resident_bytes(tm_eff)
        vmem_limit = int(min(budget, max(per_step * 5 // 4, 32 << 20)))
        vmem_limit = max(vmem_limit, per_step)   # never clamp below the real footprint

        # Deeper x buffering only when HBM-bound (small H) and there is work to hide.
        x_mode = pl.Buffered(3) if (Hp <= 1024 and grid_m >= 3) else None
        resident = pl.Buffered(1)                # constant-index operands: DMA'd once

        out2d = pl.pallas_call(
            _ffnn_resident_kernel,
            out_shape=jax.ShapeDtypeStruct((M, Hp), x.dtype),
            grid_spec=pltpu.PrefetchScalarGridSpec(
                num_scalar_prefetch=0,
                grid=(grid_m,),
                in_specs=[
                    pl.BlockSpec((tm_eff, Hp), lambda i: (i, 0), pipeline_mode=x_mode),
                    pl.BlockSpec((Hp, Hp), lambda i: (0, 0), pipeline_mode=resident),
                    pl.BlockSpec((1, Hp), lambda i: (0, 0), pipeline_mode=resident),
                    pl.BlockSpec((Hp, Hp), lambda i: (0, 0), pipeline_mode=resident),
                    pl.BlockSpec((1, Hp), lambda i: (0, 0), pipeline_mode=resident),
                ],
                out_specs=pl.BlockSpec((tm_eff, Hp), lambda i: (i, 0)),
            ),
            compiler_params=pltpu.CompilerParams(
                dimension_semantics=("parallel",),
                vmem_limit_bytes=vmem_limit,
            ),
            cost_estimate=cost,
        )(x2d, w1_in, b1_in, w2_in, b2_in)
    else:
        # Largest multiple of 128 that is <= min(tk, Hp) and divides Hp.
        tk_eff = max(128, min(tk, Hp) - (min(tk, Hp) % 128))
        while Hp % tk_eff != 0:
            tk_eff -= 128
        # Shrink the streamed slab, then the row tile, until it fits the budget.
        while streamed_bytes(tm_eff, tk_eff) > budget and tk_eff > 128:
            tk_eff -= 128
            while Hp % tk_eff != 0:
                tk_eff -= 128
        while streamed_bytes(tm_eff, tk_eff) > budget and tm_eff > 64:
            tm_eff = max(64, _round_up(tm_eff // 2, 8))
        # TODO(synk): if even (tm=64, tk=128) exceeds the budget, also tile the output
        # hidden dim (3-D grid) instead of relying on compiler spills.
        grid_m = pl.cdiv(M, tm_eff)
        grid_k = Hp // tk_eff

        per_step = streamed_bytes(tm_eff, tk_eff)
        vmem_limit = int(min(budget, max(per_step * 5 // 4, 32 << 20)))
        vmem_limit = max(vmem_limit, per_step)

        out2d = pl.pallas_call(
            _ffnn_streamed_kernel,
            out_shape=jax.ShapeDtypeStruct((M, Hp), x.dtype),
            grid_spec=pltpu.PrefetchScalarGridSpec(
                num_scalar_prefetch=0,
                grid=(grid_m, grid_k),
                in_specs=[
                    pl.BlockSpec((tm_eff, Hp), lambda i, k: (i, 0)),   # x (const over k)
                    pl.BlockSpec((Hp, tk_eff), lambda i, k: (0, k)),   # W1 column slab
                    pl.BlockSpec((1, tk_eff), lambda i, k: (0, k)),    # b1 slab
                    pl.BlockSpec((tk_eff, Hp), lambda i, k: (k, 0)),   # W2 row slab
                    pl.BlockSpec((1, Hp), lambda i, k: (0, 0),
                                 pipeline_mode=pl.Buffered(1)),        # b2 (resident)
                ],
                out_specs=pl.BlockSpec((tm_eff, Hp), lambda i, k: (i, 0)),
                scratch_shapes=[pltpu.VMEM((tm_eff, Hp), jnp.float32)],
            ),
            compiler_params=pltpu.CompilerParams(
                dimension_semantics=("parallel", "arbitrary"),
                vmem_limit_bytes=vmem_limit,
            ),
            cost_estimate=cost,
        )(x2d, w1_in, b1_in, w2_in, b2_in)

    out2d = out2d if Hp == H else out2d[:, :H]
    return out2d.reshape(batch, seq, H)


def init_params(key, hidden_dim, dtype=jnp.float32):
    # Mirror nn.Linear default init: U(-1/sqrt(fan_in), 1/sqrt(fan_in)).
    k1, k2, k3, k4 = jax.random.split(key, 4)
    bound = 1.0 / (hidden_dim ** 0.5)
    # Stored as (in, out) = transpose of PyTorch's (out, in) layout.
    w1 = jax.random.uniform(k1, (hidden_dim, hidden_dim), dtype, -bound, bound)
    b1 = jax.random.uniform(k2, (hidden_dim,), dtype, -bound, bound)
    w2 = jax.random.uniform(k3, (hidden_dim, hidden_dim), dtype, -bound, bound)
    b2 = jax.random.uniform(k4, (hidden_dim,), dtype, -bound, bound)
    return w1, b1, w2, b2


if __name__ == "__main__":
    key = jax.random.PRNGKey(0)
    kx, kp, kx2, kp2 = jax.random.split(key, 4)

    # --- Resident (fully VMEM-resident weights) path, strict f32 check. ---
    batch, seq, hidden = 2, 8, 32
    x = jax.random.normal(kx, (batch, seq, hidden), jnp.float32)
    w1, b1, w2, b2 = init_params(kp, hidden, dtype=jnp.float32)

    out = jax.block_until_ready(pointwise_ffnn(x, w1, b1, w2, b2))
    ref = jnp.maximum(x @ w1 + b1, 0.0) @ w2 + b2
    assert out.shape == x.shape
    assert jnp.allclose(out, ref, atol=1e-5, rtol=1e-5), "f32 resident path mismatch"

    # --- bf16 (MXU-native) inputs with f32 accumulation; looser tolerance. ---
    xb = x.astype(jnp.bfloat16)
    w1b, b1b, w2b, b2b = (t.astype(jnp.bfloat16) for t in (w1, b1, w2, b2))
    outb = jax.block_until_ready(pointwise_ffnn(xb, w1b, b1b, w2b, b2b))
    assert jnp.allclose(outb.astype(jnp.float32), ref, atol=1e-1, rtol=1e-1), "bf16 mismatch"

    # --- Weight-streaming fallback (the path large H takes on v7x), exercised at small
    #     shapes: 2 row tiles (last one ragged: 111 rows, tm=64) x 2 hidden slabs. ---
    batch2, seq2, hidden2 = 3, 37, 256
    x2 = jax.random.normal(kx2, (batch2, seq2, hidden2), jnp.float32)
    p2 = init_params(kp2, hidden2, dtype=jnp.float32)
    out2_tiled = jax.block_until_ready(
        pointwise_ffnn(x2, *p2, tm=64, tk=128, force_tiled=True))
    out2_res = jax.block_until_ready(pointwise_ffnn(x2, *p2))
    ref2 = jnp.maximum(x2 @ p2[0] + p2[1], 0.0) @ p2[2] + p2[3]
    assert out2_tiled.shape == x2.shape
    assert jnp.allclose(out2_tiled, out2_res, atol=1e-4, rtol=1e-4), "tiled vs resident mismatch"
    assert jnp.allclose(out2_tiled, ref2, atol=2e-2, rtol=2e-2), "streamed path mismatch"

    print("KERNEL_OK")
</pallas_src>

<mosaic_0001>
module attributes {stable_mosaic.version = 11 : i64} {
  func.func @_ffnn_resident_kernel(%arg0: i32, %arg1: memref<16x128xf32, #tpu.memory_space<vmem>>, %arg2: memref<128x128xf32, #tpu.memory_space<vmem>>, %arg3: memref<1x128xf32, #tpu.memory_space<vmem>>, %arg4: memref<128x128xf32, #tpu.memory_space<vmem>>, %arg5: memref<1x128xf32, #tpu.memory_space<vmem>>, %arg6: memref<16x128xf32, #tpu.memory_space<vmem>>) attributes {dimension_semantics = [#tpu.dimension_semantics<parallel>], iteration_bounds = array<i64: 1>, scalar_prefetch = 0 : i64, scratch_operands = 0 : i64, tpu.core_type = #tpu.core_type<tc>, window_params = [{transform_indices = @transform_0, window_bounds = array<i64: 16, 128>}, {pipeline_mode = #tpu.pipeline_mode<synchronous>, transform_indices = @transform_1, window_bounds = array<i64: 128, 128>}, {pipeline_mode = #tpu.pipeline_mode<synchronous>, transform_indices = @transform_2, window_bounds = array<i64: 1, 128>}, {pipeline_mode = #tpu.pipeline_mode<synchronous>, transform_indices = @transform_3, window_bounds = array<i64: 128, 128>}, {pipeline_mode = #tpu.pipeline_mode<synchronous>, transform_indices = @transform_4, window_bounds = array<i64: 1, 128>}, {transform_indices = @transform_5, window_bounds = array<i64: 16, 128>}]} {
    %c0 = arith.constant 0 : index
    %c0_0 = arith.constant 0 : index
    %0 = vector.load %arg1[%c0, %c0_0] : memref<16x128xf32, #tpu.memory_space<vmem>>, vector<16x128xf32>
    %c0_1 = arith.constant 0 : index
    %c0_2 = arith.constant 0 : index
    %1 = vector.load %arg2[%c0_1, %c0_2] : memref<128x128xf32, #tpu.memory_space<vmem>>, vector<128x128xf32>
    %cst = arith.constant dense<0.000000e+00> : vector<16x128xf32>
    %2 = tpu.matmul %0, %1, %cst {dimension_numbers = #tpu.dot_dimension_numbers<[1], [0], [0], [1], [0, 0, 1, 1], [], []>} : vector<16x128xf32>, vector<128x128xf32>, vector<16x128xf32> -> vector<16x128xf32>
    %c0_3 = arith.constant 0 : index
    %c0_4 = arith.constant 0 : index
    %3 = vector.load %arg3[%c0_3, %c0_4] : memref<1x128xf32, #tpu.memory_space<vmem>>, vector<1x128xf32>
    %4 = vector.broadcast %3 : vector<1x128xf32> to vector<16x128xf32>
    %5 = arith.addf %2, %4 : vector<16x128xf32>
    %cst_5 = arith.constant 0.000000e+00 : f32
    %6 = vector.broadcast %cst_5 : f32 to vector<16x128xf32>
    %7 = arith.maximumf %5, %6 : vector<16x128xf32>
    %c0_6 = arith.constant 0 : index
    %c0_7 = arith.constant 0 : index
    %8 = vector.load %arg4[%c0_6, %c0_7] : memref<128x128xf32, #tpu.memory_space<vmem>>, vector<128x128xf32>
    %cst_8 = arith.constant dense<0.000000e+00> : vector<16x128xf32>
    %9 = tpu.matmul %7, %8, %cst_8 {dimension_numbers = #tpu.dot_dimension_numbers<[1], [0], [0], [1], [0, 0, 1, 1], [], []>} : vector<16x128xf32>, vector<128x128xf32>, vector<16x128xf32> -> vector<16x128xf32>
    %c0_9 = arith.constant 0 : index
    %c0_10 = arith.constant 0 : index
    %10 = vector.load %arg5[%c0_9, %c0_10] : memref<1x128xf32, #tpu.memory_space<vmem>>, vector<1x128xf32>
    %11 = vector.broadcast %10 : vector<1x128xf32> to vector<16x128xf32>
    %12 = arith.addf %9, %11 : vector<16x128xf32>
    %c0_11 = arith.constant 0 : index
    %c0_12 = arith.constant 0 : index
    %13 = vector.load %arg6[%c0_11, %c0_12] : memref<16x128xf32, #tpu.memory_space<vmem>>, vector<16x128xf32>
    tpu.vector_store %arg6[%c0_11, %c0_12], %12 {strides = array<i32>} : memref<16x128xf32, #tpu.memory_space<vmem>>, vector<16x128xf32>,
    return
  }
  func.func @transform_0(%arg0: i32) -> (i32, i32) {
    %c0_i32 = arith.constant 0 : i32
    %c0_i32_0 = arith.constant 0 : i32
    return %arg0, %c0_i32 : i32, i32
  }
  func.func @transform_1(%arg0: i32) -> (i32, i32) {
    %c0_i32 = arith.constant 0 : i32
    %c0_i32_0 = arith.constant 0 : i32
    %c0_i32_1 = arith.constant 0 : i32
    return %c0_i32, %c0_i32_0 : i32, i32
  }
  func.func @transform_2(%arg0: i32) -> (i32, i32) {
    %c0_i32 = arith.constant 0 : i32
    %c0_i32_0 = arith.constant 0 : i32
    %c0_i32_1 = arith.constant 0 : i32
    return %c0_i32, %c0_i32_0 : i32, i32
  }
  func.func @transform_3(%arg0: i32) -> (i32, i32) {
    %c0_i32 = arith.constant 0 : i32
    %c0_i32_0 = arith.constant 0 : i32
    %c0_i32_1 = arith.constant 0 : i32
    return %c0_i32, %c0_i32_0 : i32, i32
  }
  func.func @transform_4(%arg0: i32) -> (i32, i32) {
    %c0_i32 = arith.constant 0 : i32
    %c0_i32_0 = arith.constant 0 : i32
    %c0_i32_1 = arith.constant 0 : i32
    return %c0_i32, %c0_i32_0 : i32, i32
  }
  func.func @transform_5(%arg0: i32) -> (i32, i32) {
    %c0_i32 = arith.constant 0 : i32
    %c0_i32_0 = arith.constant 0 : i32
    return %arg0, %c0_i32 : i32, i32
  }
}

</mosaic_0001>

<llo_original>
// kernel: pointwise_ffnn.1
$region0: #{pointwise_ffnn.1}
  #allocation0 [shape = 'u32[]', space=smem, size = 0x4, offset = 0x4, fixed_abs, tag = 'smem constant byte address 0x4 - core index']
  #allocation1 [shape = 'u32[144,128]{1,0:T(1,128)}', space=vmem, size = 0x12000, scoped, tag = 'internal scratch']
  %s0 = inlined_call_operand.vmem [shape: f32[16,128], index: 0, kind: input, shape index: {}]
  %s1 = inlined_call_operand.vmem [shape: f32[128,128], index: 1, kind: input, shape index: {}]
  %s2 = inlined_call_operand.vmem [shape: f32[1,128], index: 2, kind: input, shape index: {}]
  %s3 = inlined_call_operand.vmem [shape: f32[128,128], index: 3, kind: input, shape index: {}]
  %s4 = inlined_call_operand.vmem [shape: f32[1,128], index: 4, kind: input, shape index: {}]
  %s5 = inlined_call_operand.vmem [shape: f32[16,128], index: 5, kind: output, shape index: {}]
  %s6 = sld [smem:[#allocation0]]
  $region30: #{pointwise_ffnn.1} parent=0
    _
  %s8 = ssub.s32 1, %s6
  %s9 = scalar_select 0, %s8, %s6
  // Predicated region
  $region2: #{pointwise_ffnn.1} parent=0 // pred_check
    _
  $region3: #{pointwise_ffnn.1} parent=0 // pred_check_branch
    %11 = sbr.rel (0) target = $region5
  $region4: #{pointwise_ffnn.1} parent=0 // pred_region
    _
  $region5: #{pointwise_ffnn.1} parent=0 // pred_fallthru
    _
  // Predicated region
  $region6: #{pointwise_ffnn.1} parent=0 // pred_check
    _
  $region7: #{pointwise_ffnn.1} parent=0 // pred_check_branch
    %13 = sbr.rel (0) target = $region9
  $region8: #{pointwise_ffnn.1} parent=0 // pred_region
    _
  $region9: #{pointwise_ffnn.1} parent=0 // pred_fallthru
    _
  // Predicated region
  $region10: #{pointwise_ffnn.1} parent=0 // pred_check
    _
  $region11: #{pointwise_ffnn.1} parent=0 // pred_check_branch
    %15 = sbr.rel (0) target = $region13
  $region12: #{pointwise_ffnn.1} parent=0 // pred_region
    _
  $region13: #{pointwise_ffnn.1} parent=0 // pred_fallthru
    _
  // Predicated region
  $region14: #{pointwise_ffnn.1} parent=0 // pred_check
    _
  $region15: #{pointwise_ffnn.1} parent=0 // pred_check_branch
    %17 = sbr.rel (0) target = $region17
  $region16: #{pointwise_ffnn.1} parent=0 // pred_region
    _
  $region17: #{pointwise_ffnn.1} parent=0 // pred_fallthru
    _
  // Predicated region
  $region18: #{pointwise_ffnn.1} parent=0 // pred_check
    _
  $region19: #{pointwise_ffnn.1} parent=0 // pred_check_branch
    %19 = sbr.rel (0) target = $region21
  $region20: #{pointwise_ffnn.1} parent=0 // pred_region
    _
  $region21: #{pointwise_ffnn.1} parent=0 // pred_fallthru
    _
  %v20 = vld [vmem:[%s0] sm:$0xff]
  %v21 = vld [vmem:[%s0 + $0x8] sm:$0xff]
  %v22 = vld [vmem:[%s1] sm:$0xff]
  %v23 = vld [vmem:[%s1 + $0x8] sm:$0xff]
  %v24 = vld [vmem:[%s1 + $0x10] sm:$0xff]
  %v25 = vld [vmem:[%s1 + $0x18] sm:$0xff]
  %v26 = vld [vmem:[%s1 + $0x20] sm:$0xff]
  %v27 = vld [vmem:[%s1 + $0x28] sm:$0xff]
  %v28 = vld [vmem:[%s1 + $0x30] sm:$0xff]
  %v29 = vld [vmem:[%s1 + $0x38] sm:$0xff]
  %v30 = vld [vmem:[%s1 + $0x40] sm:$0xff]
  %v31 = vld [vmem:[%s1 + $0x48] sm:$0xff]
  %v32 = vld [vmem:[%s1 + $0x50] sm:$0xff]
  %v33 = vld [vmem:[%s1 + $0x58] sm:$0xff]
  %v34 = vld [vmem:[%s1 + $0x60] sm:$0xff]
  %v35 = vld [vmem:[%s1 + $0x68] sm:$0xff]
  %v36 = vld [vmem:[%s1 + $0x70] sm:$0xff]
  %v37 = vld [vmem:[%s1 + $0x78] sm:$0xff]
  %v38 = vld [vmem:[%s2] sm:$0x1]
  %v40 = vlaneseq
  %v41 = vshrl.u32 %v40, 7
  %v42 = vsub.s32 0, %v41
  %v43 = vrot.slane %v38, %v42
  %45 = vmatprep.subr.mxu0 0.0
  %46 = vmatpush1.msra.mxu0 %v22
  %47 = vmatprep.subr.mxu0 0.0
  %48 = vmatpush1.msra.mxu0 %v23
  %49 = vmatprep.subr.mxu0 0.0
  %50 = vmatpush1.msra.mxu0 %v24
  %51 = vmatprep.subr.mxu0 0.0
  %52 = vmatpush1.msra.mxu0 %v25
  %53 = vmatprep.subr.mxu0 0.0
  %54 = vmatpush1.msra.mxu0 %v26
  %55 = vmatprep.subr.mxu0 0.0
  %56 = vmatpush1.msra.mxu0 %v27
  %57 = vmatprep.subr.mxu0 0.0
  %58 = vmatpush1.msra.mxu0 %v28
  %59 = vmatprep.subr.mxu0 0.0
  %60 = vmatpush1.msra.mxu0 %v29
  %61 = vmatprep.subr.mxu0 0.0
  %62 = vmatpush1.msra.mxu0 %v30
  %63 = vmatprep.subr.mxu0 0.0
  %64 = vmatpush1.msra.mxu0 %v31
  %65 = vmatprep.subr.mxu0 0.0
  %66 = vmatpush1.msra.mxu0 %v32
  %67 = vmatprep.subr.mxu0 0.0
  %68 = vmatpush1.msra.mxu0 %v33
  %69 = vmatprep.subr.mxu0 0.0
  %70 = vmatpush1.msra.mxu0 %v34
  %71 = vmatprep.subr.mxu0 0.0
  %72 = vmatpush1.msra.mxu0 %v35
  %73 = vmatprep.subr.mxu0 0.0
  %74 = vmatpush1.msra.mxu0 %v36
  %75 = vmatprep.subr.mxu0 0.0
  %76 = vmatpush1.msra.mxu0 %v37
  %77 = vmatprep.subr.mxu0 0.0
  %78 = vmatpush1.msra.mxu0 0.0
  %79 = vmatprep.subr.mxu0 0.0
  %80 = vmatpush1.msra.mxu0 0.0
  %81 = vmatprep.subr.mxu0 0.0
  %82 = vmatpush1.msra.mxu0 0.0
  %83 = vmatprep.subr.mxu0 0.0
  %84 = vmatpush1.msra.mxu0 0.0
  %85 = vmatprep.subr.mxu0 0.0
  %86 = vmatpush1.msra.mxu0 0.0
  %87 = vmatprep.subr.mxu0 0.0
  %88 = vmatpush1.msra.mxu0 0.0
  %89 = vmatprep.subr.mxu0 0.0
  %90 = vmatpush1.msra.mxu0 0.0
  %91 = vmatprep.subr.mxu0 0.0
  %92 = vmatpush1.msra.mxu0 0.0
  %93 = vmatprep.subr.mxu0 0.0
  %94 = vmatpush1.msra.mxu0 0.0
  %95 = vmatprep.subr.mxu0 0.0
  %96 = vmatpush1.msra.mxu0 0.0
  %97 = vmatprep.subr.mxu0 0.0
  %98 = vmatpush1.msra.mxu0 0.0
  %99 = vmatprep.subr.mxu0 0.0
  %100 = vmatpush1.msra.mxu0 0.0
  %101 = vmatprep.subr.mxu0 0.0
  %102 = vmatpush1.msra.mxu0 0.0
  %103 = vmatprep.subr.mxu0 0.0
  %104 = vmatpush1.msra.mxu0 0.0
  %105 = vmatprep.subr.mxu0 0.0
  %106 = vmatpush1.msra.mxu0 0.0
  %107 = vmatprep.subr.mxu0 0.0
  %108 = vmatpush1.msra.mxu0 0.0
  %109 = vmatprep.mubr.f32.mxu0 0.0
  %110 = vmatmul.mubr.f32.gmra.mrb[0].mxu0 %v20
  %v111 = vpop.f32.mrb[0].mxu0
  %v112 = vadd.f32 %v43, %v111
  %v113 = vpop.f32.mrb[0].mxu0
  %114 = vmatprep.mubr.f32.mxu0 0.0
  %115 = vmatmul.mubr.f32.gmra.mrb[0].mxu0 %v21
  %v116 = vpop.f32.mrb[0].mxu0
  %v117 = vadd.f32 %v43, %v116
  %v118 = vpop.f32.mrb[0].mxu0
  %119 = vdwg.mxu0
  %v120 = vmax.f32 %v112, 0.0
  %v121 = vmax.f32 %v117, 0.0
  %v122 = vld [vmem:[%s3] sm:$0xff]
  %v123 = vld [vmem:[%s3 + $0x8] sm:$0xff]
  %v124 = vld [vmem:[%s3 + $0x10] sm:$0xff]
  %v125 = vld [vmem:[%s3 + $0x18] sm:$0xff]
  %v126 = vld [vmem:[%s3 + $0x20] sm:$0xff]
  %v127 = vld [vmem:[%s3 + $0x28] sm:$0xff]
  %v128 = vld [vmem:[%s3 + $0x30] sm:$0xff]
  %v129 = vld [vmem:[%s3 + $0x38] sm:$0xff]
  %v130 = vld [vmem:[%s3 + $0x40] sm:$0xff]
  %v131 = vld [vmem:[%s3 + $0x48] sm:$0xff]
  %v132 = vld [vmem:[%s3 + $0x50] sm:$0xff]
  %v133 = vld [vmem:[%s3 + $0x58] sm:$0xff]
  %v134 = vld [vmem:[%s3 + $0x60] sm:$0xff]
  %v135 = vld [vmem:[%s3 + $0x68] sm:$0xff]
  %v136 = vld [vmem:[%s3 + $0x70] sm:$0xff]
  %v137 = vld [vmem:[%s3 + $0x78] sm:$0xff]
  %v138 = vld [vmem:[%s4] sm:$0x1]
  %v140 = vlaneseq
  %v141 = vshrl.u32 %v140, 7
  %v142 = vsub.s32 0, %v141
  %v143 = vrot.slane %v138, %v142
  %145 = vmatprep.subr.mxu0 0.0
  %146 = vmatpush1.msra.mxu0 %v122
  %147 = vmatprep.subr.mxu0 0.0
  %148 = vmatpush1.msra.mxu0 %v123
  %149 = vmatprep.subr.mxu0 0.0
  %150 = vmatpush1.msra.mxu0 %v124
  %151 = vmatprep.subr.mxu0 0.0
  %152 = vmatpush1.msra.mxu0 %v125
  %153 = vmatprep.subr.mxu0 0.0
  %154 = vmatpush1.msra.mxu0 %v126
  %155 = vmatprep.subr.mxu0 0.0
  %156 = vmatpush1.msra.mxu0 %v127
  %157 = vmatprep.subr.mxu0 0.0
  %158 = vmatpush1.msra.mxu0 %v128
  %159 = vmatprep.subr.mxu0 0.0
  %160 = vmatpush1.msra.mxu0 %v129
  %161 = vmatprep.subr.mxu0 0.0
  %162 = vmatpush1.msra.mxu0 %v130
  %163 = vmatprep.subr.mxu0 0.0
  %164 = vmatpush1.msra.mxu0 %v131
  %165 = vmatprep.subr.mxu0 0.0
  %166 = vmatpush1.msra.mxu0 %v132
  %167 = vmatprep.subr.mxu0 0.0
  %168 = vmatpush1.msra.mxu0 %v133
  %169 = vmatprep.subr.mxu0 0.0
  %170 = vmatpush1.msra.mxu0 %v134
  %171 = vmatprep.subr.mxu0 0.0
  %172 = vmatpush1.msra.mxu0 %v135
  %173 = vmatprep.subr.mxu0 0.0
  %174 = vmatpush1.msra.mxu0 %v136
  %175 = vmatprep.subr.mxu0 0.0
  %176 = vmatpush1.msra.mxu0 %v137
  %177 = vmatprep.subr.mxu0 0.0
  %178 = vmatpush1.msra.mxu0 0.0
  %179 = vmatprep.subr.mxu0 0.0
  %180 = vmatpush1.msra.mxu0 0.0
  %181 = vmatprep.subr.mxu0 0.0
  %182 = vmatpush1.msra.mxu0 0.0
  %183 = vmatprep.subr.mxu0 0.0
  %184 = vmatpush1.msra.mxu0 0.0
  %185 = vmatprep.subr.mxu0 0.0
  %186 = vmatpush1.msra.mxu0 0.0
  %187 = vmatprep.subr.mxu0 0.0
  %188 = vmatpush1.msra.mxu0 0.0
  %189 = vmatprep.subr.mxu0 0.0
  %190 = vmatpush1.msra.mxu0 0.0
  %191 = vmatprep.subr.mxu0 0.0
  %192 = vmatpush1.msra.mxu0 0.0
  %193 = vmatprep.subr.mxu0 0.0
  %194 = vmatpush1.msra.mxu0 0.0
  %195 = vmatprep.subr.mxu0 0.0
  %196 = vmatpush1.msra.mxu0 0.0
  %197 = vmatprep.subr.mxu0 0.0
  %198 = vmatpush1.msra.mxu0 0.0
  %199 = vmatprep.subr.mxu0 0.0
  %200 = vmatpush1.msra.mxu0 0.0
  %201 = vmatprep.subr.mxu0 0.0
  %202 = vmatpush1.msra.mxu0 0.0
  %203 = vmatprep.subr.mxu0 0.0
  %204 = vmatpush1.msra.mxu0 0.0
  %205 = vmatprep.subr.mxu0 0.0
  %206 = vmatpush1.msra.mxu0 0.0
  %207 = vmatprep.subr.mxu0 0.0
  %208 = vmatpush1.msra.mxu0 0.0
  %209 = vmatprep.mubr.f32.mxu0 0.0
  %210 = vmatmul.mubr.f32.gmra.mrb[0].mxu0 %v120
  %v211 = vpop.f32.mrb[0].mxu0
  %v212 = vadd.f32 %v143, %v211
  %v213 = vpop.f32.mrb[0].mxu0
  %214 = vmatprep.mubr.f32.mxu0 0.0
  %215 = vmatmul.mubr.f32.gmra.mrb[0].mxu0 %v121
  %v216 = vpop.f32.mrb[0].mxu0
  %v217 = vadd.f32 %v143, %v216
  %v218 = vpop.f32.mrb[0].mxu0
  %219 = vdwg.mxu0
  %220 = vst [vmem:[%s5] sm:$0xff] %v212
  %221 = vst [vmem:[%s5 + $0x8] sm:$0xff] %v217
  // Predicated region
  $region22: #{pointwise_ffnn.1} parent=0 // pred_check
    _
  $region23: #{pointwise_ffnn.1} parent=0 // pred_check_branch
    %223 = sbr.rel (0) target = $region25
  $region24: #{pointwise_ffnn.1} parent=0 // pred_region
    _
  $region25: #{pointwise_ffnn.1} parent=0 // pred_fallthru
    _
  // Predicated region
  $region26: #{pointwise_ffnn.1} parent=0 // pred_check
    _
  $region27: #{pointwise_ffnn.1} parent=0 // pred_check_branch
    %225 = sbr.rel (0) target = $region29
  $region28: #{pointwise_ffnn.1} parent=0 // pred_region
    _
  $region29: #{pointwise_ffnn.1} parent=0 // pred_fallthru
    _

</llo_original>
